<compile_context>
chip_gen: v7x
topology: tpu7x:2x2x1
jax: 0.10.0
libtpu: 0.0.40
codegen_flags: <defaults>
</compile_context>

<pallas_src>
import jax
import jax.numpy as jnp
from jax.experimental import pallas as pl
from jax.experimental.pallas import tpu as pltpu


def _round_up(x, m):
    return ((x + m - 1) // m) * m


def discriminator_kernel(x_ref, w1_ref, b1_ref, w2_ref, b2_ref, w3_ref, b3_ref,
                         out_ref):
    x = x_ref[...]                                              # (TB, D) bf16

    # Linear 1 (MXU, bf16 x bf16 -> f32 accumulate) + LeakyReLU(0.2) in f32.
    h1 = jnp.dot(x, w1_ref[...], preferred_element_type=jnp.float32)
    h1 = h1 + b1_ref[...]
    h1 = jnp.where(h1 > 0, h1, 0.2 * h1)

    # Linear 2 (MXU) + LeakyReLU(0.2).
    h2 = jnp.dot(h1.astype(jnp.bfloat16), w2_ref[...],
                 preferred_element_type=jnp.float32)
    h2 = h2 + b2_ref[...]
    h2 = jnp.where(h2 > 0, h2, 0.2 * h2)

    # Linear 3 (256 -> 1): VPU multiply + cross-lane reduce instead of a
    # 1/256-utilized MXU pass.  w3 is stored as a (1, 256) f32 row vector.
    h3 = jnp.sum(h2 * w3_ref[...], axis=-1, keepdims=True) + b3_ref[...]

    # Sigmoid on the EUP: exp + approximate reciprocal (free bundle slot).
    sig = pl.reciprocal(1.0 + jnp.exp(-h3), approx=True)

    # Lane-dense (TB, 128) store; column 0 carries the result.
    out_ref[...] = jnp.broadcast_to(sig, out_ref.shape)


def discriminator_forward(img, params, *, batch_tile=256):
    """img: (B, C, H, W) float32 -> (B, 1) float32 validity score."""
    B = img.shape[0]
    x = img.reshape(B, -1).astype(jnp.bfloat16)                 # flatten (glue)
    D = x.shape[1]
    w1, b1, w2, b2, w3, b3 = params

    # Batch tile: multiple of 8 sublanes, capped at `batch_tile` (>=256 is the
    # MXU-friendly choice on v6e/v7x; small B just rounds up to 8).
    tb = min(batch_tile, _round_up(B, 8))
    b_pad = _round_up(B, tb)
    if b_pad != B:
        x = jnp.pad(x, ((0, b_pad - B), (0, 0)))
    grid = (b_pad // tb,)

    out = pl.pallas_call(
        discriminator_kernel,
        out_shape=jax.ShapeDtypeStruct((b_pad, 128), jnp.float32),
        grid=grid,
        in_specs=[
            pl.BlockSpec((tb, D), lambda i: (i, 0)),        # x tile (pipelined)
            pl.BlockSpec((D, 512), lambda i: (0, 0)),       # w1 (resident)
            pl.BlockSpec((1, 512), lambda i: (0, 0)),       # b1
            pl.BlockSpec((512, 256), lambda i: (0, 0)),     # w2
            pl.BlockSpec((1, 256), lambda i: (0, 0)),       # b2
            pl.BlockSpec((1, 256), lambda i: (0, 0)),       # w3 (row vector)
            pl.BlockSpec((1, 1), lambda i: (0, 0)),         # b3
        ],
        out_specs=pl.BlockSpec((tb, 128), lambda i: (i, 0)),
        compiler_params=pltpu.CompilerParams(
            dimension_semantics=("parallel",)),
    )(x, w1, b1, w2, b2, w3, b3)

    return out[:B, :1]


def init_params(key, in_features):
    """Deterministic synthetic parameters (PyTorch Linear-style uniform init).

    Matmul weights (w1, w2) are stored bf16 (MXU path); biases and the tiny
    final row-vector weight stay f32 (VPU epilogue)."""
    k1w, k1b, k2w, k2b, k3w, k3b = jax.random.split(key, 6)

    bound1 = 1.0 / (in_features ** 0.5)
    w1 = jax.random.uniform(k1w, (in_features, 512), jnp.float32,
                            -bound1, bound1).astype(jnp.bfloat16)
    b1 = jax.random.uniform(k1b, (1, 512), jnp.float32, -bound1, bound1)

    bound2 = 1.0 / (512 ** 0.5)
    w2 = jax.random.uniform(k2w, (512, 256), jnp.float32,
                            -bound2, bound2).astype(jnp.bfloat16)
    b2 = jax.random.uniform(k2b, (1, 256), jnp.float32, -bound2, bound2)

    bound3 = 1.0 / (256 ** 0.5)
    w3 = jax.random.uniform(k3w, (1, 256), jnp.float32, -bound3, bound3)
    b3 = jax.random.uniform(k3b, (1, 1), jnp.float32, -bound3, bound3)

    return (w1, b1, w2, b2, w3, b3)


def reference_forward(img, params):
    """Pure-JAX reference following the same bf16-matmul / f32-accumulate path."""
    w1, b1, w2, b2, w3, b3 = params
    x = img.reshape(img.shape[0], -1).astype(jnp.bfloat16)
    h = jnp.dot(x, w1, preferred_element_type=jnp.float32) + b1
    h = jnp.where(h > 0, h, 0.2 * h)
    h = jnp.dot(h.astype(jnp.bfloat16), w2,
                preferred_element_type=jnp.float32) + b2
    h = jnp.where(h > 0, h, 0.2 * h)
    h = jnp.sum(h * w3, axis=-1, keepdims=True) + b3
    return jax.nn.sigmoid(h)


if __name__ == "__main__":
    # Small shapes consistent with the module: channels=1, img_size=16
    # (img_shape = (1, 16, 16) -> in_features = 256), batch=2.
    B, C, H, W = 2, 1, 16, 16

    key = jax.random.PRNGKey(0)
    k_img, k_par = jax.random.split(key)
    img = jax.random.normal(k_img, (B, C, H, W), jnp.float32)
    params = init_params(k_par, C * H * W)

    out = discriminator_forward(img, params)
    out = jax.block_until_ready(out)

    ref = reference_forward(img, params)
    assert out.shape == (B, 1)
    assert bool(jnp.all(jnp.isfinite(out)))
    # bf16 matmul path matched in the reference; tolerance covers the EUP
    # approximate-reciprocal sigmoid and MXU accumulation-order differences.
    assert jnp.allclose(out, ref, atol=5e-3), (out, ref)

    print("KERNEL_OK")
</pallas_src>

<mosaic_0001>
module attributes {stable_mosaic.version = 11 : i64} {
  func.func @discriminator_kernel(%arg0: i32, %arg1: memref<8x256xbf16, #tpu.memory_space<vmem>>, %arg2: memref<256x512xbf16, #tpu.memory_space<vmem>>, %arg3: memref<1x512xf32, #tpu.memory_space<vmem>>, %arg4: memref<512x256xbf16, #tpu.memory_space<vmem>>, %arg5: memref<1x256xf32, #tpu.memory_space<vmem>>, %arg6: memref<1x256xf32, #tpu.memory_space<vmem>>, %arg7: memref<1x1xf32, #tpu.memory_space<vmem>>, %arg8: memref<8x128xf32, #tpu.memory_space<vmem>>) attributes {dimension_semantics = [#tpu.dimension_semantics<parallel>], iteration_bounds = array<i64: 1>, scalar_prefetch = 0 : i64, scratch_operands = 0 : i64, tpu.core_type = #tpu.core_type<tc>, window_params = [{transform_indices = @transform_0, window_bounds = array<i64: 8, 256>}, {pipeline_mode = #tpu.pipeline_mode<synchronous>, transform_indices = @transform_1, window_bounds = array<i64: 256, 512>}, {pipeline_mode = #tpu.pipeline_mode<synchronous>, transform_indices = @transform_2, window_bounds = array<i64: 1, 512>}, {pipeline_mode = #tpu.pipeline_mode<synchronous>, transform_indices = @transform_3, window_bounds = array<i64: 512, 256>}, {pipeline_mode = #tpu.pipeline_mode<synchronous>, transform_indices = @transform_4, window_bounds = array<i64: 1, 256>}, {pipeline_mode = #tpu.pipeline_mode<synchronous>, transform_indices = @transform_5, window_bounds = array<i64: 1, 256>}, {pipeline_mode = #tpu.pipeline_mode<synchronous>, transform_indices = @transform_6, window_bounds = array<i64: 1, 1>}, {transform_indices = @transform_7, window_bounds = array<i64: 8, 128>}]} {
    %c0 = arith.constant 0 : index
    %c0_0 = arith.constant 0 : index
    %0 = vector.load %arg1[%c0, %c0_0] : memref<8x256xbf16, #tpu.memory_space<vmem>>, vector<8x256xbf16>
    %c0_1 = arith.constant 0 : index
    %c0_2 = arith.constant 0 : index
    %1 = vector.load %arg2[%c0_1, %c0_2] : memref<256x512xbf16, #tpu.memory_space<vmem>>, vector<256x512xbf16>
    %cst = arith.constant dense<0.000000e+00> : vector<8x512xf32>
    %2 = tpu.matmul %0, %1, %cst {dimension_numbers = #tpu.dot_dimension_numbers<[1], [0], [0], [1], [0, 0, 1, 1], [], []>} : vector<8x256xbf16>, vector<256x512xbf16>, vector<8x512xf32> -> vector<8x512xf32>
    %c0_3 = arith.constant 0 : index
    %c0_4 = arith.constant 0 : index
    %3 = vector.load %arg3[%c0_3, %c0_4] : memref<1x512xf32, #tpu.memory_space<vmem>>, vector<1x512xf32>
    %4 = vector.broadcast %3 : vector<1x512xf32> to vector<8x512xf32>
    %5 = arith.addf %2, %4 : vector<8x512xf32>
    %cst_5 = arith.constant 0.000000e+00 : f32
    %6 = vector.broadcast %cst_5 : f32 to vector<8x512xf32>
    %7 = arith.cmpf ogt, %5, %6 : vector<8x512xf32>
    %cst_6 = arith.constant 2.000000e-01 : f32
    %8 = vector.broadcast %cst_6 : f32 to vector<8x512xf32>
    %9 = arith.mulf %8, %5 : vector<8x512xf32>
    %10 = arith.select %7, %5, %9 : vector<8x512xi1>, vector<8x512xf32>
    %11 = arith.truncf %10 : vector<8x512xf32> to vector<8x512xbf16>
    %c0_7 = arith.constant 0 : index
    %c0_8 = arith.constant 0 : index
    %12 = vector.load %arg4[%c0_7, %c0_8] : memref<512x256xbf16, #tpu.memory_space<vmem>>, vector<512x256xbf16>
    %cst_9 = arith.constant dense<0.000000e+00> : vector<8x256xf32>
    %13 = tpu.matmul %11, %12, %cst_9 {dimension_numbers = #tpu.dot_dimension_numbers<[1], [0], [0], [1], [0, 0, 1, 1], [], []>} : vector<8x512xbf16>, vector<512x256xbf16>, vector<8x256xf32> -> vector<8x256xf32>
    %c0_10 = arith.constant 0 : index
    %c0_11 = arith.constant 0 : index
    %14 = vector.load %arg5[%c0_10, %c0_11] : memref<1x256xf32, #tpu.memory_space<vmem>>, vector<1x256xf32>
    %15 = vector.broadcast %14 : vector<1x256xf32> to vector<8x256xf32>
    %16 = arith.addf %13, %15 : vector<8x256xf32>
    %cst_12 = arith.constant 0.000000e+00 : f32
    %17 = vector.broadcast %cst_12 : f32 to vector<8x256xf32>
    %18 = arith.cmpf ogt, %16, %17 : vector<8x256xf32>
    %cst_13 = arith.constant 2.000000e-01 : f32
    %19 = vector.broadcast %cst_13 : f32 to vector<8x256xf32>
    %20 = arith.mulf %19, %16 : vector<8x256xf32>
    %21 = arith.select %18, %16, %20 : vector<8x256xi1>, vector<8x256xf32>
    %c0_14 = arith.constant 0 : index
    %c0_15 = arith.constant 0 : index
    %22 = vector.load %arg6[%c0_14, %c0_15] : memref<1x256xf32, #tpu.memory_space<vmem>>, vector<1x256xf32>
    %23 = vector.broadcast %22 : vector<1x256xf32> to vector<8x256xf32>
    %24 = arith.mulf %21, %23 : vector<8x256xf32>
    %cst_16 = arith.constant dense<0.000000e+00> : vector<8xf32>
    %25 = vector.multi_reduction <add>, %24, %cst_16 [1] : vector<8x256xf32> to vector<8xf32>
    %26 = vector.shape_cast %25 : vector<8xf32> to vector<8x1xf32>
    %c0_17 = arith.constant 0 : index
    %c0_18 = arith.constant 0 : index
    %27 = vector.load %arg7[%c0_17, %c0_18] : memref<1x1xf32, #tpu.memory_space<vmem>>, vector<1x1xf32>
    %28 = vector.broadcast %27 : vector<1x1xf32> to vector<8x1xf32>
    %29 = arith.addf %26, %28 : vector<8x1xf32>
    %cst_19 = arith.constant 0.000000e+00 : f32
    %30 = vector.broadcast %cst_19 : f32 to vector<8x1xf32>
    %31 = arith.subf %30, %29 : vector<8x1xf32>
    %32 = math.exp %31 : vector<8x1xf32>
    %cst_20 = arith.constant 1.000000e+00 : f32
    %33 = vector.broadcast %cst_20 : f32 to vector<8x1xf32>
    %34 = arith.addf %33, %32 : vector<8x1xf32>
    %35 = tpu.reciprocal %34 {approx = true} : vector<8x1xf32> -> vector<8x1xf32>
    %36 = vector.shape_cast %35 : vector<8x1xf32> to vector<8x1xf32>
    %37 = vector.broadcast %36 : vector<8x1xf32> to vector<8x128xf32>
    %c0_21 = arith.constant 0 : index
    %c0_22 = arith.constant 0 : index
    %38 = vector.load %arg8[%c0_21, %c0_22] : memref<8x128xf32, #tpu.memory_space<vmem>>, vector<8x128xf32>
    tpu.vector_store %arg8[%c0_21, %c0_22], %37 {strides = array<i32>} : memref<8x128xf32, #tpu.memory_space<vmem>>, vector<8x128xf32>,
    return
  }
  func.func @transform_0(%arg0: i32) -> (i32, i32) {
    %c0_i32 = arith.constant 0 : i32
    %c0_i32_0 = arith.constant 0 : i32
    return %arg0, %c0_i32 : i32, i32
  }
  func.func @transform_1(%arg0: i32) -> (i32, i32) {
    %c0_i32 = arith.constant 0 : i32
    %c0_i32_0 = arith.constant 0 : i32
    %c0_i32_1 = arith.constant 0 : i32
    return %c0_i32, %c0_i32_0 : i32, i32
  }
  func.func @transform_2(%arg0: i32) -> (i32, i32) {
    %c0_i32 = arith.constant 0 : i32
    %c0_i32_0 = arith.constant 0 : i32
    %c0_i32_1 = arith.constant 0 : i32
    return %c0_i32, %c0_i32_0 : i32, i32
  }
  func.func @transform_3(%arg0: i32) -> (i32, i32) {
    %c0_i32 = arith.constant 0 : i32
    %c0_i32_0 = arith.constant 0 : i32
    %c0_i32_1 = arith.constant 0 : i32
    return %c0_i32, %c0_i32_0 : i32, i32
  }
  func.func @transform_4(%arg0: i32) -> (i32, i32) {
    %c0_i32 = arith.constant 0 : i32
    %c0_i32_0 = arith.constant 0 : i32
    %c0_i32_1 = arith.constant 0 : i32
    return %c0_i32, %c0_i32_0 : i32, i32
  }
  func.func @transform_5(%arg0: i32) -> (i32, i32) {
    %c0_i32 = arith.constant 0 : i32
    %c0_i32_0 = arith.constant 0 : i32
    %c0_i32_1 = arith.constant 0 : i32
    return %c0_i32, %c0_i32_0 : i32, i32
  }
  func.func @transform_6(%arg0: i32) -> (i32, i32) {
    %c0_i32 = arith.constant 0 : i32
    %c0_i32_0 = arith.constant 0 : i32
    %c0_i32_1 = arith.constant 0 : i32
    return %c0_i32, %c0_i32_0 : i32, i32
  }
  func.func @transform_7(%arg0: i32) -> (i32, i32) {
    %c0_i32 = arith.constant 0 : i32
    %c0_i32_0 = arith.constant 0 : i32
    return %arg0, %c0_i32 : i32, i32
  }
}

</mosaic_0001>

<llo_original>
// kernel: tpu_custom_call.1
$region0: #{tpu_custom_call.1}
  #allocation0 [shape = 'u32[]', space=smem, size = 0x4, offset = 0x4, fixed_abs, tag = 'smem constant byte address 0x4 - core index']
  #allocation1 [shape = 'u32[144,128]{1,0:T(1,128)}', space=vmem, size = 0x12000, scoped, tag = 'internal scratch']
  #allocation2 [shape = 'f32[1,1]{1,0:T(1,128)S(1)}', space=vmem, size = 0x200, scoped, tag = 'scoped memory for tpu_custom_call.1']
  %s0 = inlined_call_operand.hbm [shape: bf16[8,256], index: 0, kind: input, shape index: {}]
  %s1 = inlined_call_operand.hbm [shape: bf16[256,512], index: 1, kind: input, shape index: {}]
  %s2 = inlined_call_operand.vmem [shape: f32[1,512], index: 2, kind: input, shape index: {}]
  %s3 = inlined_call_operand.hbm [shape: bf16[512,256], index: 3, kind: input, shape index: {}]
  %s4 = inlined_call_operand.vmem [shape: f32[1,256], index: 4, kind: input, shape index: {}]
  %s5 = inlined_call_operand.vmem [shape: f32[1,256], index: 5, kind: input, shape index: {}]
  %s6 = inlined_call_operand.<no memory space> [shape: f32[1,1], index: 6, kind: input, shape index: {}]
  %s7 = inlined_call_operand.hbm [shape: f32[8,128], index: 7, kind: output, shape index: {}]
  %s8 = sld [smem:[#allocation0]]
  $region50: #{tpu_custom_call.1} parent=0
    _
  %s10 = ssub.s32 1, %s8
  %s11 = scalar_select 0, %s10, %s8
  %v12 = vstv %s6
  %13 = vst [vmem:[#allocation2] sm:$0x1] %v12
  $region1: #{tpu_custom_call.1} parent=0
    #allocation3 [shape = 'u8[4096]{0}', space=vmem, size = 0x1000, scoped, tag = 'input window, operand 0, single buffered']
    #allocation4 [shape = 's32[1]{0}', space=sflag, size = 0x4, scoped, tag = 'scoped memory for tpu_custom_call.1']
    #allocation5 [shape = 's32[1]{0}', space=sflag, size = 0x4, scoped, tag = 'scoped memory for tpu_custom_call.1']
    #allocation6 [shape = 'u8[262144]{0}', space=vmem, size = 0x40000, scoped, tag = 'input window, operand 1, single buffered']
    #allocation7 [shape = 's32[1]{0}', space=sflag, size = 0x4, scoped, tag = 'scoped memory for tpu_custom_call.1']
    #allocation8 [shape = 'u8[262144]{0}', space=vmem, size = 0x40000, scoped, tag = 'input window, operand 3, single buffered']
    #allocation9 [shape = 'u8[4096]{0}', space=vmem, size = 0x1000, scoped, tag = 'output window, operand 0, single buffered']
    %14 = vsyncpa [#allocation4], 0
    %15 = vsyncpa [#allocation7], 0
    %16 = vsyncpa [#allocation5], 0
    // Predicated region
    $region2: #{tpu_custom_call.1} parent=1 // pred_check
      _
    $region3: #{tpu_custom_call.1} parent=1 // pred_check_branch
      %18 = sbr.rel (0) target = $region5
    $region4: #{tpu_custom_call.1} parent=1 // pred_region
      %s20 = ssub.s32 128, 128
      %21 = vsyncadd [#allocation4], %s20
      %s23 = sshll.u32 [#allocation3], 4
      %s24 = int_to_ptr.vmem [resolvable:$true] %s23
      %26 = dma.hbm_to_vmem [thread:$0]  %s0, 128, %s24, [#allocation4]
    $region5: #{tpu_custom_call.1} parent=1 // pred_fallthru
      _
    // Predicated region
    $region6: #{tpu_custom_call.1} parent=1 // pred_check
      _
    $region7: #{tpu_custom_call.1} parent=1 // pred_check_branch
      %28 = sbr.rel (0) target = $region9
    $region8: #{tpu_custom_call.1} parent=1 // pred_region
      %s30 = ssub.s32 8192, 8192
      %31 = vsyncadd [#allocation7], %s30
      %s32 = sshll.u32 [#allocation6], 4
      %s33 = int_to_ptr.vmem [resolvable:$true] %s32
      %38 = dma.hbm_to_vmem [thread:$0]  %s1, 8192, %s33, [#allocation7], 256, 256, 16
    $region9: #{tpu_custom_call.1} parent=1 // pred_fallthru
      _
    // Predicated region
    $region10: #{tpu_custom_call.1} parent=1 // pred_check
      _
    $region11: #{tpu_custom_call.1} parent=1 // pred_check_branch
      %40 = sbr.rel (0) target = $region13
    $region12: #{tpu_custom_call.1} parent=1 // pred_region
      _
    $region13: #{tpu_custom_call.1} parent=1 // pred_fallthru
      _
    // Predicated region
    $region14: #{tpu_custom_call.1} parent=1 // pred_check
      _
    $region15: #{tpu_custom_call.1} parent=1 // pred_check_branch
      %42 = sbr.rel (0) target = $region17
    $region16: #{tpu_custom_call.1} parent=1 // pred_region
      %s44 = ssub.s32 8192, 8192
      %45 = vsyncadd [#allocation7], %s44
      %s46 = sshll.u32 [#allocation8], 4
      %s47 = int_to_ptr.vmem [resolvable:$true] %s46
      %52 = dma.hbm_to_vmem [thread:$0]  %s3, 8192, %s47, [#allocation7], 128, 128, 8
    $region17: #{tpu_custom_call.1} parent=1 // pred_fallthru
      _
    // Predicated region
    $region18: #{tpu_custom_call.1} parent=1 // pred_check
      _
    $region19: #{tpu_custom_call.1} parent=1 // pred_check_branch
      %54 = sbr.rel (0) target = $region21
    $region20: #{tpu_custom_call.1} parent=1 // pred_region
      _
    $region21: #{tpu_custom_call.1} parent=1 // pred_fallthru
      _
    // Predicated region
    $region22: #{tpu_custom_call.1} parent=1 // pred_check
      _
    $region23: #{tpu_custom_call.1} parent=1 // pred_check_branch
      %56 = sbr.rel (0) target = $region25
    $region24: #{tpu_custom_call.1} parent=1 // pred_region
      _
    $region25: #{tpu_custom_call.1} parent=1 // pred_fallthru
      _
    // Predicated region
    $region26: #{tpu_custom_call.1} parent=1 // pred_check
      _
    $region27: #{tpu_custom_call.1} parent=1 // pred_check_branch
      %58 = sbr.rel (0) target = $region29
    $region28: #{tpu_custom_call.1} parent=1 // pred_region
      _
    $region29: #{tpu_custom_call.1} parent=1 // pred_fallthru
      _
    // Predicated region
    $region30: #{tpu_custom_call.1} parent=1 // pred_check
      _
    $region31: #{tpu_custom_call.1} parent=1 // pred_check_branch
      %60 = sbr.rel (0) target = $region33
    $region32: #{tpu_custom_call.1} parent=1 // pred_region
      %61 = dma.done [#allocation4], 128
    $region33: #{tpu_custom_call.1} parent=1 // pred_fallthru
      _
    // Predicated region
    $region34: #{tpu_custom_call.1} parent=1 // pred_check
      _
    $region35: #{tpu_custom_call.1} parent=1 // pred_check_branch
      %63 = sbr.rel (0) target = $region37
    $region36: #{tpu_custom_call.1} parent=1 // pred_region
      %64 = dma.done [#allocation7], 8192
    $region37: #{tpu_custom_call.1} parent=1 // pred_fallthru
      _
    // Predicated region
    $region38: #{tpu_custom_call.1} parent=1 // pred_check
      _
    $region39: #{tpu_custom_call.1} parent=1 // pred_check_branch
      %66 = sbr.rel (0) target = $region41
    $region40: #{tpu_custom_call.1} parent=1 // pred_region
      %67 = dma.done [#allocation7], 8192
    $region41: #{tpu_custom_call.1} parent=1 // pred_fallthru
      _
    %v68 = vld [vmem:[#allocation3] sm:$0xff]
    %v69 = vld [vmem:[#allocation6] sm:$0xff]
    %v70 = vld [vmem:[#allocation6 + $0x8] sm:$0xff]
    %v71 = vld [vmem:[#allocation6 + $0x10] sm:$0xff]
    %v72 = vld [vmem:[#allocation6 + $0x18] sm:$0xff]
    %v73 = vld [vmem:[#allocation6 + $0x20] sm:$0xff]
    %v74 = vld [vmem:[#allocation6 + $0x28] sm:$0xff]
    %v75 = vld [vmem:[#allocation6 + $0x30] sm:$0xff]
    %v76 = vld [vmem:[#allocation6 + $0x38] sm:$0xff]
    %v77 = vld [vmem:[#allocation6 + $0x40] sm:$0xff]
    %v78 = vld [vmem:[#allocation6 + $0x48] sm:$0xff]
    %v79 = vld [vmem:[#allocation6 + $0x50] sm:$0xff]
    %v80 = vld [vmem:[#allocation6 + $0x58] sm:$0xff]
    %v81 = vld [vmem:[#allocation6 + $0x60] sm:$0xff]
    %v82 = vld [vmem:[#allocation6 + $0x68] sm:$0xff]
    %v83 = vld [vmem:[#allocation6 + $0x70] sm:$0xff]
    %v84 = vld [vmem:[#allocation6 + $0x78] sm:$0xff]
    %v85 = vld [vmem:[#allocation6 + $0x80] sm:$0xff]
    %v86 = vld [vmem:[#allocation6 + $0x88] sm:$0xff]
    %v87 = vld [vmem:[#allocation6 + $0x90] sm:$0xff]
    %v88 = vld [vmem:[#allocation6 + $0x98] sm:$0xff]
    %v89 = vld [vmem:[#allocation6 + $0xa0] sm:$0xff]
    %v90 = vld [vmem:[#allocation6 + $0xa8] sm:$0xff]
    %v91 = vld [vmem:[#allocation6 + $0xb0] sm:$0xff]
    %v92 = vld [vmem:[#allocation6 + $0xb8] sm:$0xff]
    %v93 = vld [vmem:[#allocation6 + $0xc0] sm:$0xff]
    %v94 = vld [vmem:[#allocation6 + $0xc8] sm:$0xff]
    %v95 = vld [vmem:[#allocation6 + $0xd0] sm:$0xff]
    %v96 = vld [vmem:[#allocation6 + $0xd8] sm:$0xff]
    %v97 = vld [vmem:[#allocation6 + $0xe0] sm:$0xff]
    %v98 = vld [vmem:[#allocation6 + $0xe8] sm:$0xff]
    %v99 = vld [vmem:[#allocation6 + $0xf0] sm:$0xff]
    %v100 = vld [vmem:[#allocation6 + $0xf8] sm:$0xff]
    %v101 = vld [vmem:[#allocation6 + $0x100] sm:$0xff]
    %v102 = vld [vmem:[#allocation6 + $0x108] sm:$0xff]
    %v103 = vld [vmem:[#allocation6 + $0x110] sm:$0xff]
    %v104 = vld [vmem:[#allocation6 + $0x118] sm:$0xff]
    %v105 = vld [vmem:[#allocation6 + $0x120] sm:$0xff]
    %v106 = vld [vmem:[#allocation6 + $0x128] sm:$0xff]
    %v107 = vld [vmem:[#allocation6 + $0x130] sm:$0xff]
    %v108 = vld [vmem:[#allocation6 + $0x138] sm:$0xff]
    %v109 = vld [vmem:[#allocation6 + $0x140] sm:$0xff]
    %v110 = vld [vmem:[#allocation6 + $0x148] sm:$0xff]
    %v111 = vld [vmem:[#allocation6 + $0x150] sm:$0xff]
    %v112 = vld [vmem:[#allocation6 + $0x158] sm:$0xff]
    %v113 = vld [vmem:[#allocation6 + $0x160] sm:$0xff]
    %v114 = vld [vmem:[#allocation6 + $0x168] sm:$0xff]
    %v115 = vld [vmem:[#allocation6 + $0x170] sm:$0xff]
    %v116 = vld [vmem:[#allocation6 + $0x178] sm:$0xff]
    %v117 = vld [vmem:[#allocation6 + $0x180] sm:$0xff]
    %v118 = vld [vmem:[#allocation6 + $0x188] sm:$0xff]
    %v119 = vld [vmem:[#allocation6 + $0x190] sm:$0xff]
    %v120 = vld [vmem:[#allocation6 + $0x198] sm:$0xff]
    %v121 = vld [vmem:[#allocation6 + $0x1a0] sm:$0xff]
    %v122 = vld [vmem:[#allocation6 + $0x1a8] sm:$0xff]
    %v123 = vld [vmem:[#allocation6 + $0x1b0] sm:$0xff]
    %v124 = vld [vmem:[#allocation6 + $0x1b8] sm:$0xff]
    %v125 = vld [vmem:[#allocation6 + $0x1c0] sm:$0xff]
    %v126 = vld [vmem:[#allocation6 + $0x1c8] sm:$0xff]
    %v127 = vld [vmem:[#allocation6 + $0x1d0] sm:$0xff]
    %v128 = vld [vmem:[#allocation6 + $0x1d8] sm:$0xff]
    %v129 = vld [vmem:[#allocation6 + $0x1e0] sm:$0xff]
    %v130 = vld [vmem:[#allocation6 + $0x1e8] sm:$0xff]
    %v131 = vld [vmem:[#allocation6 + $0x1f0] sm:$0xff]
    %v132 = vld [vmem:[#allocation6 + $0x1f8] sm:$0xff]
    %v133 = vld [vmem:[%s2] sm:$0xf]
    %v135 = vlaneseq
    %v136 = vshrl.u32 %v135, 7
    %v137 = vsub.s32 0, %v136
    %v138 = vrot.slane %v133, %v137
    %v139 = vlaneseq
    %v140 = vshrl.u32 %v139, 7
    %v141 = vsub.s32 1, %v140
    %v142 = vrot.slane %v133, %v141
    %v143 = vlaneseq
    %v144 = vshrl.u32 %v143, 7
    %v145 = vsub.s32 2, %v144
    %v146 = vrot.slane %v133, %v145
    %v147 = vlaneseq
    %v148 = vshrl.u32 %v147, 7
    %v149 = vsub.s32 3, %v148
    %v150 = vrot.slane %v133, %v149
    %v156 = vunpack.c.l.b16 %v68
    %v157 = vunpack.c.h.b16 %v68
    %v158 = vpack.c.b16 %v156, %v156
    %v159 = vpack.c.b16 %v157, %v157
    %v226 = vunpack.c.l.b16 %v69
    %v227 = vunpack.c.h.b16 %v69
    %v228 = vunpack.c.l.b16 %v70
    %v229 = vunpack.c.h.b16 %v70
    %v230 = vunpack.c.l.b16 %v71
    %v231 = vunpack.c.h.b16 %v71
    %v232 = vunpack.c.l.b16 %v72
    %v233 = vunpack.c.h.b16 %v72
    %v234 = vunpack.c.l.b16 %v73
    %v235 = vunpack.c.h.b16 %v73
    %v236 = vunpack.c.l.b16 %v74
    %v237 = vunpack.c.h.b16 %v74
    %v238 = vunpack.c.l.b16 %v75
    %v239 = vunpack.c.h.b16 %v75
    %v240 = vunpack.c.l.b16 %v76
    %v241 = vunpack.c.h.b16 %v76
    %v242 = vunpack.c.l.b16 %v77
    %v243 = vunpack.c.h.b16 %v77
    %v244 = vunpack.c.l.b16 %v78
    %v245 = vunpack.c.h.b16 %v78
    %v246 = vunpack.c.l.b16 %v79
    %v247 = vunpack.c.h.b16 %v79
    %v248 = vunpack.c.l.b16 %v80
    %v249 = vunpack.c.h.b16 %v80
    %v250 = vunpack.c.l.b16 %v81
    %v251 = vunpack.c.h.b16 %v81
    %v252 = vunpack.c.l.b16 %v82
    %v253 = vunpack.c.h.b16 %v82
    %v254 = vunpack.c.l.b16 %v83
    %v255 = vunpack.c.h.b16 %v83
    %v256 = vunpack.c.l.b16 %v84
    %v257 = vunpack.c.h.b16 %v84
    %v258 = vunpack.c.l.b16 %v85
    %v259 = vunpack.c.h.b16 %v85
    %v260 = vunpack.c.l.b16 %v86
    %v261 = vunpack.c.h.b16 %v86
    %v262 = vunpack.c.l.b16 %v87
    %v263 = vunpack.c.h.b16 %v87
    %v264 = vunpack.c.l.b16 %v88
    %v265 = vunpack.c.h.b16 %v88
    %v266 = vunpack.c.l.b16 %v89
    %v267 = vunpack.c.h.b16 %v89
    %v268 = vunpack.c.l.b16 %v90
    %v269 = vunpack.c.h.b16 %v90
    %v270 = vunpack.c.l.b16 %v91
    %v271 = vunpack.c.h.b16 %v91
    %v272 = vunpack.c.l.b16 %v92
    %v273 = vunpack.c.h.b16 %v92
    %v274 = vunpack.c.l.b16 %v93
    %v275 = vunpack.c.h.b16 %v93
    %v276 = vunpack.c.l.b16 %v94
    %v277 = vunpack.c.h.b16 %v94
    %v278 = vunpack.c.l.b16 %v95
    %v279 = vunpack.c.h.b16 %v95
    %v280 = vunpack.c.l.b16 %v96
    %v281 = vunpack.c.h.b16 %v96
    %v282 = vunpack.c.l.b16 %v97
    %v283 = vunpack.c.h.b16 %v97
    %v284 = vunpack.c.l.b16 %v98
    %v285 = vunpack.c.h.b16 %v98
    %v286 = vunpack.c.l.b16 %v99
    %v287 = vunpack.c.h.b16 %v99
    %v288 = vunpack.c.l.b16 %v100
    %v289 = vunpack.c.h.b16 %v100
    %v290 = vunpack.c.l.b16 %v101
    %v291 = vunpack.c.h.b16 %v101
    %v292 = vunpack.c.l.b16 %v102
    %v293 = vunpack.c.h.b16 %v102
    %v294 = vunpack.c.l.b16 %v103
    %v295 = vunpack.c.h.b16 %v103
    %v296 = vunpack.c.l.b16 %v104
    %v297 = vunpack.c.h.b16 %v104
    %v298 = vunpack.c.l.b16 %v105
    %v299 = vunpack.c.h.b16 %v105
    %v300 = vunpack.c.l.b16 %v106
    %v301 = vunpack.c.h.b16 %v106
    %v302 = vunpack.c.l.b16 %v107
    %v303 = vunpack.c.h.b16 %v107
    %v304 = vunpack.c.l.b16 %v108
    %v305 = vunpack.c.h.b16 %v108
    %v306 = vunpack.c.l.b16 %v109
    %v307 = vunpack.c.h.b16 %v109
    %v308 = vunpack.c.l.b16 %v110
    %v309 = vunpack.c.h.b16 %v110
    %v310 = vunpack.c.l.b16 %v111
    %v311 = vunpack.c.h.b16 %v111
    %v312 = vunpack.c.l.b16 %v112
    %v313 = vunpack.c.h.b16 %v112
    %v314 = vunpack.c.l.b16 %v113
    %v315 = vunpack.c.h.b16 %v113
    %v316 = vunpack.c.l.b16 %v114
    %v317 = vunpack.c.h.b16 %v114
    %v318 = vunpack.c.l.b16 %v115
    %v319 = vunpack.c.h.b16 %v115
    %v320 = vunpack.c.l.b16 %v116
    %v321 = vunpack.c.h.b16 %v116
    %v322 = vunpack.c.l.b16 %v117
    %v323 = vunpack.c.h.b16 %v117
    %v324 = vunpack.c.l.b16 %v118
    %v325 = vunpack.c.h.b16 %v118
    %v326 = vunpack.c.l.b16 %v119
    %v327 = vunpack.c.h.b16 %v119
    %v328 = vunpack.c.l.b16 %v120
    %v329 = vunpack.c.h.b16 %v120
    %v330 = vunpack.c.l.b16 %v121
    %v331 = vunpack.c.h.b16 %v121
    %v332 = vunpack.c.l.b16 %v122
    %v333 = vunpack.c.h.b16 %v122
    %v334 = vunpack.c.l.b16 %v123
    %v335 = vunpack.c.h.b16 %v123
    %v336 = vunpack.c.l.b16 %v124
    %v337 = vunpack.c.h.b16 %v124
    %v338 = vunpack.c.l.b16 %v125
    %v339 = vunpack.c.h.b16 %v125
    %v340 = vunpack.c.l.b16 %v126
    %v341 = vunpack.c.h.b16 %v126
    %v342 = vunpack.c.l.b16 %v127
    %v343 = vunpack.c.h.b16 %v127
    %v344 = vunpack.c.l.b16 %v128
    %v345 = vunpack.c.h.b16 %v128
    %v346 = vunpack.c.l.b16 %v129
    %v347 = vunpack.c.h.b16 %v129
    %v348 = vunpack.c.l.b16 %v130
    %v349 = vunpack.c.h.b16 %v130
    %v350 = vunpack.c.l.b16 %v131
    %v351 = vunpack.c.h.b16 %v131
    %v352 = vunpack.c.l.b16 %v132
    %v353 = vunpack.c.h.b16 %v132
    %v354 = vpack.c.b16 %v230, %v226
    %v355 = vpack.c.b16 %v231, %v227
    %v356 = vpack.c.b16 %v232, %v228
    %v357 = vpack.c.b16 %v233, %v229
    %v358 = vpack.c.b16 %v238, %v234
    %v359 = vpack.c.b16 %v239, %v235
    %v360 = vpack.c.b16 %v240, %v236
    %v361 = vpack.c.b16 %v241, %v237
    %v362 = vpack.c.b16 %v246, %v242
    %v363 = vpack.c.b16 %v247, %v243
    %v364 = vpack.c.b16 %v248, %v244
    %v365 = vpack.c.b16 %v249, %v245
    %v366 = vpack.c.b16 %v254, %v250
    %v367 = vpack.c.b16 %v255, %v251
    %v368 = vpack.c.b16 %v256, %v252
    %v369 = vpack.c.b16 %v257, %v253
    %v370 = vpack.c.b16 %v262, %v258
    %v371 = vpack.c.b16 %v263, %v259
    %v372 = vpack.c.b16 %v264, %v260
    %v373 = vpack.c.b16 %v265, %v261
    %v374 = vpack.c.b16 %v270, %v266
    %v375 = vpack.c.b16 %v271, %v267
    %v376 = vpack.c.b16 %v272, %v268
    %v377 = vpack.c.b16 %v273, %v269
    %v378 = vpack.c.b16 %v278, %v274
    %v379 = vpack.c.b16 %v279, %v275
    %v380 = vpack.c.b16 %v280, %v276
    %v381 = vpack.c.b16 %v281, %v277
    %v382 = vpack.c.b16 %v286, %v282
    %v383 = vpack.c.b16 %v287, %v283
    %v384 = vpack.c.b16 %v288, %v284
    %v385 = vpack.c.b16 %v289, %v285
    %v386 = vpack.c.b16 %v294, %v290
    %v387 = vpack.c.b16 %v295, %v291
    %v388 = vpack.c.b16 %v296, %v292
    %v389 = vpack.c.b16 %v297, %v293
    %v390 = vpack.c.b16 %v302, %v298
    %v391 = vpack.c.b16 %v303, %v299
    %v392 = vpack.c.b16 %v304, %v300
    %v393 = vpack.c.b16 %v305, %v301
    %v394 = vpack.c.b16 %v310, %v306
    %v395 = vpack.c.b16 %v311, %v307
    %v396 = vpack.c.b16 %v312, %v308
    %v397 = vpack.c.b16 %v313, %v309
    %v398 = vpack.c.b16 %v318, %v314
    %v399 = vpack.c.b16 %v319, %v315
    %v400 = vpack.c.b16 %v320, %v316
    %v401 = vpack.c.b16 %v321, %v317
    %v402 = vpack.c.b16 %v326, %v322
    %v403 = vpack.c.b16 %v327, %v323
    %v404 = vpack.c.b16 %v328, %v324
    %v405 = vpack.c.b16 %v329, %v325
    %v406 = vpack.c.b16 %v334, %v330
    %v407 = vpack.c.b16 %v335, %v331
    %v408 = vpack.c.b16 %v336, %v332
    %v409 = vpack.c.b16 %v337, %v333
    %v410 = vpack.c.b16 %v342, %v338
    %v411 = vpack.c.b16 %v343, %v339
    %v412 = vpack.c.b16 %v344, %v340
    %v413 = vpack.c.b16 %v345, %v341
    %v414 = vpack.c.b16 %v350, %v346
    %v415 = vpack.c.b16 %v351, %v347
    %v416 = vpack.c.b16 %v352, %v348
    %v417 = vpack.c.b16 %v353, %v349
    %482 = vmatprep.subr.bf16.mxu0 %v355
    %483 = vmatpush1.bf16.msra.mxu0 %v354
    %484 = vmatprep.subr.bf16.mxu0 %v359
    %485 = vmatpush1.bf16.msra.mxu0 %v358
    %486 = vmatprep.subr.bf16.mxu0 %v363
    %487 = vmatpush1.bf16.msra.mxu0 %v362
    %488 = vmatprep.subr.bf16.mxu0 %v367
    %489 = vmatpush1.bf16.msra.mxu0 %v366
    %490 = vmatprep.subr.bf16.mxu0 %v371
    %491 = vmatpush1.bf16.msra.mxu0 %v370
    %492 = vmatprep.subr.bf16.mxu0 %v375
    %493 = vmatpush1.bf16.msra.mxu0 %v374
    %494 = vmatprep.subr.bf16.mxu0 %v379
    %495 = vmatpush1.bf16.msra.mxu0 %v378
    %496 = vmatprep.subr.bf16.mxu0 %v383
    %497 = vmatpush1.bf16.msra.mxu0 %v382
    %498 = vmatprep.subr.bf16.mxu0 %v387
    %499 = vmatpush1.bf16.msra.mxu0 %v386
    %500 = vmatprep.subr.bf16.mxu0 %v391
    %501 = vmatpush1.bf16.msra.mxu0 %v390
    %502 = vmatprep.subr.bf16.mxu0 %v395
    %503 = vmatpush1.bf16.msra.mxu0 %v394
    %504 = vmatprep.subr.bf16.mxu0 %v399
    %505 = vmatpush1.bf16.msra.mxu0 %v398
    %506 = vmatprep.subr.bf16.mxu0 %v403
    %507 = vmatpush1.bf16.msra.mxu0 %v402
    %508 = vmatprep.subr.bf16.mxu0 %v407
    %509 = vmatpush1.bf16.msra.mxu0 %v406
    %510 = vmatprep.subr.bf16.mxu0 %v411
    %511 = vmatpush1.bf16.msra.mxu0 %v410
    %512 = vmatprep.subr.bf16.mxu0 %v415
    %513 = vmatpush1.bf16.msra.mxu0 %v414
    %514 = vmatprep.mubr.bf16.mxu0 %v159
    %515 = vmatmul.mubr.bf16.gmra.mrb[0].mxu0 %v158
    %v516 = vpop.f32.mrb[0].mxu0
    %v517 = vadd.f32 %v138, %v516
    %v518 = vpop.f32.mrb[0].mxu0
    %v519 = vadd.f32 %v142, %v518
    %v520 = vpop.f32.mrb[0].mxu0
    %v521 = vpop.f32.mrb[0].mxu0
    %522 = vdwg.mxu0
    %523 = vmatprep.subr.bf16.mxu0 %v357
    %524 = vmatpush1.bf16.msra.mxu0 %v356
    %525 = vmatprep.subr.bf16.mxu0 %v361
    %526 = vmatpush1.bf16.msra.mxu0 %v360
    %527 = vmatprep.subr.bf16.mxu0 %v365
    %528 = vmatpush1.bf16.msra.mxu0 %v364
    %529 = vmatprep.subr.bf16.mxu0 %v369
    %530 = vmatpush1.bf16.msra.mxu0 %v368
    %531 = vmatprep.subr.bf16.mxu0 %v373
    %532 = vmatpush1.bf16.msra.mxu0 %v372
    %533 = vmatprep.subr.bf16.mxu0 %v377
    %534 = vmatpush1.bf16.msra.mxu0 %v376
    %535 = vmatprep.subr.bf16.mxu0 %v381
    %536 = vmatpush1.bf16.msra.mxu0 %v380
    %537 = vmatprep.subr.bf16.mxu0 %v385
    %538 = vmatpush1.bf16.msra.mxu0 %v384
    %539 = vmatprep.subr.bf16.mxu0 %v389
    %540 = vmatpush1.bf16.msra.mxu0 %v388
    %541 = vmatprep.subr.bf16.mxu0 %v393
    %542 = vmatpush1.bf16.msra.mxu0 %v392
    %543 = vmatprep.subr.bf16.mxu0 %v397
    %544 = vmatpush1.bf16.msra.mxu0 %v396
    %545 = vmatprep.subr.bf16.mxu0 %v401
    %546 = vmatpush1.bf16.msra.mxu0 %v400
    %547 = vmatprep.subr.bf16.mxu0 %v405
    %548 = vmatpush1.bf16.msra.mxu0 %v404
    %549 = vmatprep.subr.bf16.mxu0 %v409
    %550 = vmatpush1.bf16.msra.mxu0 %v408
    %551 = vmatprep.subr.bf16.mxu0 %v413
    %552 = vmatpush1.bf16.msra.mxu0 %v412
    %553 = vmatprep.subr.bf16.mxu0 %v417
    %554 = vmatpush1.bf16.msra.mxu0 %v416
    %555 = vmatprep.mubr.bf16.mxu0 %v159
    %556 = vmatmul.mubr.bf16.gmra.mrb[0].mxu0 %v158
    %v557 = vpop.f32.mrb[0].mxu0
    %v558 = vadd.f32 %v146, %v557
    %v559 = vpop.f32.mrb[0].mxu0
    %v560 = vadd.f32 %v150, %v559
    %v561 = vpop.f32.mrb[0].mxu0
    %v562 = vpop.f32.mrb[0].mxu0
    %563 = vdwg.mxu0
    %vm564 = vcmp.gt.f32.partialorder %v517, 0.0
    %vm565 = vcmp.gt.f32.partialorder %v519, 0.0
    %vm566 = vcmp.gt.f32.partialorder %v558, 0.0
    %vm567 = vcmp.gt.f32.partialorder %v560, 0.0
    %v568 = vmul.f32 %v517, 0.2
    %v569 = vmul.f32 %v519, 0.2
    %v570 = vmul.f32 %v558, 0.2
    %v571 = vmul.f32 %v560, 0.2
    %v572 = vsel %vm564, %v517, %v568
    %v573 = vsel %vm565, %v519, %v569
    %v574 = vsel %vm566, %v558, %v570
    %v575 = vsel %vm567, %v560, %v571
    %v576 = vpack.c.bf16 %v572, %v572
    %v577 = vpack.c.bf16 %v573, %v573
    %v578 = vpack.c.bf16 %v574, %v574
    %v579 = vpack.c.bf16 %v575, %v575
    %v580 = vld [vmem:[#allocation8] sm:$0xff]
    %v581 = vld [vmem:[#allocation8 + $0x8] sm:$0xff]
    %v582 = vld [vmem:[#allocation8 + $0x10] sm:$0xff]
    %v583 = vld [vmem:[#allocation8 + $0x18] sm:$0xff]
    %v584 = vld [vmem:[#allocation8 + $0x20] sm:$0xff]
    %v585 = vld [vmem:[#allocation8 + $0x28] sm:$0xff]
    %v586 = vld [vmem:[#allocation8 + $0x30] sm:$0xff]
    %v587 = vld [vmem:[#allocation8 + $0x38] sm:$0xff]
    %v588 = vld [vmem:[#allocation8 + $0x40] sm:$0xff]
    %v589 = vld [vmem:[#allocation8 + $0x48] sm:$0xff]
    %v590 = vld [vmem:[#allocation8 + $0x50] sm:$0xff]
    %v591 = vld [vmem:[#allocation8 + $0x58] sm:$0xff]
    %v592 = vld [vmem:[#allocation8 + $0x60] sm:$0xff]
    %v593 = vld [vmem:[#allocation8 + $0x68] sm:$0xff]
    %v594 = vld [vmem:[#allocation8 + $0x70] sm:$0xff]
    %v595 = vld [vmem:[#allocation8 + $0x78] sm:$0xff]
    %v596 = vld [vmem:[#allocation8 + $0x80] sm:$0xff]
    %v597 = vld [vmem:[#allocation8 + $0x88] sm:$0xff]
    %v598 = vld [vmem:[#allocation8 + $0x90] sm:$0xff]
    %v599 = vld [vmem:[#allocation8 + $0x98] sm:$0xff]
    %v600 = vld [vmem:[#allocation8 + $0xa0] sm:$0xff]
    %v601 = vld [vmem:[#allocation8 + $0xa8] sm:$0xff]
    %v602 = vld [vmem:[#allocation8 + $0xb0] sm:$0xff]
    %v603 = vld [vmem:[#allocation8 + $0xb8] sm:$0xff]
    %v604 = vld [vmem:[#allocation8 + $0xc0] sm:$0xff]
    %v605 = vld [vmem:[#allocation8 + $0xc8] sm:$0xff]
    %v606 = vld [vmem:[#allocation8 + $0xd0] sm:$0xff]
    %v607 = vld [vmem:[#allocation8 + $0xd8] sm:$0xff]
    %v608 = vld [vmem:[#allocation8 + $0xe0] sm:$0xff]
    %v609 = vld [vmem:[#allocation8 + $0xe8] sm:$0xff]
    %v610 = vld [vmem:[#allocation8 + $0xf0] sm:$0xff]
    %v611 = vld [vmem:[#allocation8 + $0xf8] sm:$0xff]
    %v612 = vld [vmem:[#allocation8 + $0x100] sm:$0xff]
    %v613 = vld [vmem:[#allocation8 + $0x108] sm:$0xff]
    %v614 = vld [vmem:[#allocation8 + $0x110] sm:$0xff]
    %v615 = vld [vmem:[#allocation8 + $0x118] sm:$0xff]
    %v616 = vld [vmem:[#allocation8 + $0x120] sm:$0xff]
    %v617 = vld [vmem:[#allocation8 + $0x128] sm:$0xff]
    %v618 = vld [vmem:[#allocation8 + $0x130] sm:$0xff]
    %v619 = vld [vmem:[#allocation8 + $0x138] sm:$0xff]
    %v620 = vld [vmem:[#allocation8 + $0x140] sm:$0xff]
    %v621 = vld [vmem:[#allocation8 + $0x148] sm:$0xff]
    %v622 = vld [vmem:[#allocation8 + $0x150] sm:$0xff]
    %v623 = vld [vmem:[#allocation8 + $0x158] sm:$0xff]
    %v624 = vld [vmem:[#allocation8 + $0x160] sm:$0xff]
    %v625 = vld [vmem:[#allocation8 + $0x168] sm:$0xff]
    %v626 = vld [vmem:[#allocation8 + $0x170] sm:$0xff]
    %v627 = vld [vmem:[#allocation8 + $0x178] sm:$0xff]
    %v628 = vld [vmem:[#allocation8 + $0x180] sm:$0xff]
    %v629 = vld [vmem:[#allocation8 + $0x188] sm:$0xff]
    %v630 = vld [vmem:[#allocation8 + $0x190] sm:$0xff]
    %v631 = vld [vmem:[#allocation8 + $0x198] sm:$0xff]
    %v632 = vld [vmem:[#allocation8 + $0x1a0] sm:$0xff]
    %v633 = vld [vmem:[#allocation8 + $0x1a8] sm:$0xff]
    %v634 = vld [vmem:[#allocation8 + $0x1b0] sm:$0xff]
    %v635 = vld [vmem:[#allocation8 + $0x1b8] sm:$0xff]
    %v636 = vld [vmem:[#allocation8 + $0x1c0] sm:$0xff]
    %v637 = vld [vmem:[#allocation8 + $0x1c8] sm:$0xff]
    %v638 = vld [vmem:[#allocation8 + $0x1d0] sm:$0xff]
    %v639 = vld [vmem:[#allocation8 + $0x1d8] sm:$0xff]
    %v640 = vld [vmem:[#allocation8 + $0x1e0] sm:$0xff]
    %v641 = vld [vmem:[#allocation8 + $0x1e8] sm:$0xff]
    %v642 = vld [vmem:[#allocation8 + $0x1f0] sm:$0xff]
    %v643 = vld [vmem:[#allocation8 + $0x1f8] sm:$0xff]
    %v644 = vld [vmem:[%s4] sm:$0x3]
    %v646 = vlaneseq
    %v647 = vshrl.u32 %v646, 7
    %v648 = vsub.s32 0, %v647
    %v649 = vrot.slane %v644, %v648
    %v650 = vlaneseq
    %v651 = vshrl.u32 %v650, 7
    %v652 = vsub.s32 1, %v651
    %v653 = vrot.slane %v644, %v652
    %v720 = vunpack.c.l.b16 %v580
    %v721 = vunpack.c.h.b16 %v580
    %v722 = vunpack.c.l.b16 %v581
    %v723 = vunpack.c.h.b16 %v581
    %v724 = vunpack.c.l.b16 %v582
    %v725 = vunpack.c.h.b16 %v582
    %v726 = vunpack.c.l.b16 %v583
    %v727 = vunpack.c.h.b16 %v583
    %v728 = vunpack.c.l.b16 %v584
    %v729 = vunpack.c.h.b16 %v584
    %v730 = vunpack.c.l.b16 %v585
    %v731 = vunpack.c.h.b16 %v585
    %v732 = vunpack.c.l.b16 %v586
    %v733 = vunpack.c.h.b16 %v586
    %v734 = vunpack.c.l.b16 %v587
    %v735 = vunpack.c.h.b16 %v587
    %v736 = vunpack.c.l.b16 %v588
    %v737 = vunpack.c.h.b16 %v588
    %v738 = vunpack.c.l.b16 %v589
    %v739 = vunpack.c.h.b16 %v589
    %v740 = vunpack.c.l.b16 %v590
    %v741 = vunpack.c.h.b16 %v590
    %v742 = vunpack.c.l.b16 %v591
    %v743 = vunpack.c.h.b16 %v591
    %v744 = vunpack.c.l.b16 %v592
    %v745 = vunpack.c.h.b16 %v592
    %v746 = vunpack.c.l.b16 %v593
    %v747 = vunpack.c.h.b16 %v593
    %v748 = vunpack.c.l.b16 %v594
    %v749 = vunpack.c.h.b16 %v594
    %v750 = vunpack.c.l.b16 %v595
    %v751 = vunpack.c.h.b16 %v595
    %v752 = vunpack.c.l.b16 %v596
    %v753 = vunpack.c.h.b16 %v596
    %v754 = vunpack.c.l.b16 %v597
    %v755 = vunpack.c.h.b16 %v597
    %v756 = vunpack.c.l.b16 %v598
    %v757 = vunpack.c.h.b16 %v598
    %v758 = vunpack.c.l.b16 %v599
    %v759 = vunpack.c.h.b16 %v599
    %v760 = vunpack.c.l.b16 %v600
    %v761 = vunpack.c.h.b16 %v600
    %v762 = vunpack.c.l.b16 %v601
    %v763 = vunpack.c.h.b16 %v601
    %v764 = vunpack.c.l.b16 %v602
    %v765 = vunpack.c.h.b16 %v602
    %v766 = vunpack.c.l.b16 %v603
    %v767 = vunpack.c.h.b16 %v603
    %v768 = vunpack.c.l.b16 %v604
    %v769 = vunpack.c.h.b16 %v604
    %v770 = vunpack.c.l.b16 %v605
    %v771 = vunpack.c.h.b16 %v605
    %v772 = vunpack.c.l.b16 %v606
    %v773 = vunpack.c.h.b16 %v606
    %v774 = vunpack.c.l.b16 %v607
    %v775 = vunpack.c.h.b16 %v607
    %v776 = vunpack.c.l.b16 %v608
    %v777 = vunpack.c.h.b16 %v608
    %v778 = vunpack.c.l.b16 %v609
    %v779 = vunpack.c.h.b16 %v609
    %v780 = vunpack.c.l.b16 %v610
    %v781 = vunpack.c.h.b16 %v610
    %v782 = vunpack.c.l.b16 %v611
    %v783 = vunpack.c.h.b16 %v611
    %v784 = vunpack.c.l.b16 %v612
    %v785 = vunpack.c.h.b16 %v612
    %v786 = vunpack.c.l.b16 %v613
    %v787 = vunpack.c.h.b16 %v613
    %v788 = vunpack.c.l.b16 %v614
    %v789 = vunpack.c.h.b16 %v614
    %v790 = vunpack.c.l.b16 %v615
    %v791 = vunpack.c.h.b16 %v615
    %v792 = vunpack.c.l.b16 %v616
    %v793 = vunpack.c.h.b16 %v616
    %v794 = vunpack.c.l.b16 %v617
    %v795 = vunpack.c.h.b16 %v617
    %v796 = vunpack.c.l.b16 %v618
    %v797 = vunpack.c.h.b16 %v618
    %v798 = vunpack.c.l.b16 %v619
    %v799 = vunpack.c.h.b16 %v619
    %v800 = vunpack.c.l.b16 %v620
    %v801 = vunpack.c.h.b16 %v620
    %v802 = vunpack.c.l.b16 %v621
    %v803 = vunpack.c.h.b16 %v621
    %v804 = vunpack.c.l.b16 %v622
    %v805 = vunpack.c.h.b16 %v622
    %v806 = vunpack.c.l.b16 %v623
    %v807 = vunpack.c.h.b16 %v623
    %v808 = vunpack.c.l.b16 %v624
    %v809 = vunpack.c.h.b16 %v624
    %v810 = vunpack.c.l.b16 %v625
    %v811 = vunpack.c.h.b16 %v625
    %v812 = vunpack.c.l.b16 %v626
    %v813 = vunpack.c.h.b16 %v626
    %v814 = vunpack.c.l.b16 %v627
    %v815 = vunpack.c.h.b16 %v627
    %v816 = vunpack.c.l.b16 %v628
    %v817 = vunpack.c.h.b16 %v628
    %v818 = vunpack.c.l.b16 %v629
    %v819 = vunpack.c.h.b16 %v629
    %v820 = vunpack.c.l.b16 %v630
    %v821 = vunpack.c.h.b16 %v630
    %v822 = vunpack.c.l.b16 %v631
    %v823 = vunpack.c.h.b16 %v631
    %v824 = vunpack.c.l.b16 %v632
    %v825 = vunpack.c.h.b16 %v632
    %v826 = vunpack.c.l.b16 %v633
    %v827 = vunpack.c.h.b16 %v633
    %v828 = vunpack.c.l.b16 %v634
    %v829 = vunpack.c.h.b16 %v634
    %v830 = vunpack.c.l.b16 %v635
    %v831 = vunpack.c.h.b16 %v635
    %v832 = vunpack.c.l.b16 %v636
    %v833 = vunpack.c.h.b16 %v636
    %v834 = vunpack.c.l.b16 %v637
    %v835 = vunpack.c.h.b16 %v637
    %v836 = vunpack.c.l.b16 %v638
    %v837 = vunpack.c.h.b16 %v638
    %v838 = vunpack.c.l.b16 %v639
    %v839 = vunpack.c.h.b16 %v639
    %v840 = vunpack.c.l.b16 %v640
    %v841 = vunpack.c.h.b16 %v640
    %v842 = vunpack.c.l.b16 %v641
    %v843 = vunpack.c.h.b16 %v641
    %v844 = vunpack.c.l.b16 %v642
    %v845 = vunpack.c.h.b16 %v642
    %v846 = vunpack.c.l.b16 %v643
    %v847 = vunpack.c.h.b16 %v643
    %v848 = vpack.c.b16 %v722, %v720
    %v849 = vpack.c.b16 %v723, %v721
    %v850 = vpack.c.b16 %v726, %v724
    %v851 = vpack.c.b16 %v727, %v725
    %v852 = vpack.c.b16 %v730, %v728
    %v853 = vpack.c.b16 %v731, %v729
    %v854 = vpack.c.b16 %v734, %v732
    %v855 = vpack.c.b16 %v735, %v733
    %v856 = vpack.c.b16 %v738, %v736
    %v857 = vpack.c.b16 %v739, %v737
    %v858 = vpack.c.b16 %v742, %v740
    %v859 = vpack.c.b16 %v743, %v741
    %v860 = vpack.c.b16 %v746, %v744
    %v861 = vpack.c.b16 %v747, %v745
    %v862 = vpack.c.b16 %v750, %v748
    %v863 = vpack.c.b16 %v751, %v749
    %v864 = vpack.c.b16 %v754, %v752
    %v865 = vpack.c.b16 %v755, %v753
    %v866 = vpack.c.b16 %v758, %v756
    %v867 = vpack.c.b16 %v759, %v757
    %v868 = vpack.c.b16 %v762, %v760
    %v869 = vpack.c.b16 %v763, %v761
    %v870 = vpack.c.b16 %v766, %v764
    %v871 = vpack.c.b16 %v767, %v765
    %v872 = vpack.c.b16 %v770, %v768
    %v873 = vpack.c.b16 %v771, %v769
    %v874 = vpack.c.b16 %v774, %v772
    %v875 = vpack.c.b16 %v775, %v773
    %v876 = vpack.c.b16 %v778, %v776
    %v877 = vpack.c.b16 %v779, %v777
    %v878 = vpack.c.b16 %v782, %v780
    %v879 = vpack.c.b16 %v783, %v781
    %v880 = vpack.c.b16 %v786, %v784
    %v881 = vpack.c.b16 %v787, %v785
    %v882 = vpack.c.b16 %v790, %v788
    %v883 = vpack.c.b16 %v791, %v789
    %v884 = vpack.c.b16 %v794, %v792
    %v885 = vpack.c.b16 %v795, %v793
    %v886 = vpack.c.b16 %v798, %v796
    %v887 = vpack.c.b16 %v799, %v797
    %v888 = vpack.c.b16 %v802, %v800
    %v889 = vpack.c.b16 %v803, %v801
    %v890 = vpack.c.b16 %v806, %v804
    %v891 = vpack.c.b16 %v807, %v805
    %v892 = vpack.c.b16 %v810, %v808
    %v893 = vpack.c.b16 %v811, %v809
    %v894 = vpack.c.b16 %v814, %v812
    %v895 = vpack.c.b16 %v815, %v813
    %v896 = vpack.c.b16 %v818, %v816
    %v897 = vpack.c.b16 %v819, %v817
    %v898 = vpack.c.b16 %v822, %v820
    %v899 = vpack.c.b16 %v823, %v821
    %v900 = vpack.c.b16 %v826, %v824
    %v901 = vpack.c.b16 %v827, %v825
    %v902 = vpack.c.b16 %v830, %v828
    %v903 = vpack.c.b16 %v831, %v829
    %v904 = vpack.c.b16 %v834, %v832
    %v905 = vpack.c.b16 %v835, %v833
    %v906 = vpack.c.b16 %v838, %v836
    %v907 = vpack.c.b16 %v839, %v837
    %v908 = vpack.c.b16 %v842, %v840
    %v909 = vpack.c.b16 %v843, %v841
    %v910 = vpack.c.b16 %v846, %v844
    %v911 = vpack.c.b16 %v847, %v845
    %976 = vmatprep.subr.bf16.mxu0 %v849
    %977 = vmatpush1.bf16.msra.mxu0 %v848
    %978 = vmatprep.subr.bf16.mxu0 %v851
    %979 = vmatpush1.bf16.msra.mxu0 %v850
    %980 = vmatprep.subr.bf16.mxu0 %v853
    %981 = vmatpush1.bf16.msra.mxu0 %v852
    %982 = vmatprep.subr.bf16.mxu0 %v855
    %983 = vmatpush1.bf16.msra.mxu0 %v854
    %984 = vmatprep.subr.bf16.mxu0 %v857
    %985 = vmatpush1.bf16.msra.mxu0 %v856
    %986 = vmatprep.subr.bf16.mxu0 %v859
    %987 = vmatpush1.bf16.msra.mxu0 %v858
    %988 = vmatprep.subr.bf16.mxu0 %v861
    %989 = vmatpush1.bf16.msra.mxu0 %v860
    %990 = vmatprep.subr.bf16.mxu0 %v863
    %991 = vmatpush1.bf16.msra.mxu0 %v862
    %992 = vmatprep.subr.bf16.mxu0 %v865
    %993 = vmatpush1.bf16.msra.mxu0 %v864
    %994 = vmatprep.subr.bf16.mxu0 %v867
    %995 = vmatpush1.bf16.msra.mxu0 %v866
    %996 = vmatprep.subr.bf16.mxu0 %v869
    %997 = vmatpush1.bf16.msra.mxu0 %v868
    %998 = vmatprep.subr.bf16.mxu0 %v871
    %999 = vmatpush1.bf16.msra.mxu0 %v870
    %1000 = vmatprep.subr.bf16.mxu0 %v873
    %1001 = vmatpush1.bf16.msra.mxu0 %v872
    %1002 = vmatprep.subr.bf16.mxu0 %v875
    %1003 = vmatpush1.bf16.msra.mxu0 %v874
    %1004 = vmatprep.subr.bf16.mxu0 %v877
    %1005 = vmatpush1.bf16.msra.mxu0 %v876
    %1006 = vmatprep.subr.bf16.mxu0 %v879
    %1007 = vmatpush1.bf16.msra.mxu0 %v878
    %1008 = vmatprep.mubr.bf16.mxu0 %v577
    %1009 = vmatmul.mubr.bf16.gmra.mrb[0].mxu0 %v576
    %v1010 = vpop.f32.mrb[0].mxu0
    %v1011 = vadd.f32 %v649, %v1010
    %v1012 = vpop.f32.mrb[0].mxu0
    %v1013 = vadd.f32 %v653, %v1012
    %v1014 = vpop.f32.mrb[0].mxu0
    %v1015 = vpop.f32.mrb[0].mxu0
    %1016 = vdwg.mxu0
    %1017 = vmatprep.subr.bf16.mxu0 %v881
    %1018 = vmatpush1.bf16.msra.mxu0 %v880
    %1019 = vmatprep.subr.bf16.mxu0 %v883
    %1020 = vmatpush1.bf16.msra.mxu0 %v882
    %1021 = vmatprep.subr.bf16.mxu0 %v885
    %1022 = vmatpush1.bf16.msra.mxu0 %v884
    %1023 = vmatprep.subr.bf16.mxu0 %v887
    %1024 = vmatpush1.bf16.msra.mxu0 %v886
    %1025 = vmatprep.subr.bf16.mxu0 %v889
    %1026 = vmatpush1.bf16.msra.mxu0 %v888
    %1027 = vmatprep.subr.bf16.mxu0 %v891
    %1028 = vmatpush1.bf16.msra.mxu0 %v890
    %1029 = vmatprep.subr.bf16.mxu0 %v893
    %1030 = vmatpush1.bf16.msra.mxu0 %v892
    %1031 = vmatprep.subr.bf16.mxu0 %v895
    %1032 = vmatpush1.bf16.msra.mxu0 %v894
    %1033 = vmatprep.subr.bf16.mxu0 %v897
    %1034 = vmatpush1.bf16.msra.mxu0 %v896
    %1035 = vmatprep.subr.bf16.mxu0 %v899
    %1036 = vmatpush1.bf16.msra.mxu0 %v898
    %1037 = vmatprep.subr.bf16.mxu0 %v901
    %1038 = vmatpush1.bf16.msra.mxu0 %v900
    %1039 = vmatprep.subr.bf16.mxu0 %v903
    %1040 = vmatpush1.bf16.msra.mxu0 %v902
    %1041 = vmatprep.subr.bf16.mxu0 %v905
    %1042 = vmatpush1.bf16.msra.mxu0 %v904
    %1043 = vmatprep.subr.bf16.mxu0 %v907
    %1044 = vmatpush1.bf16.msra.mxu0 %v906
    %1045 = vmatprep.subr.bf16.mxu0 %v909
    %1046 = vmatpush1.bf16.msra.mxu0 %v908
    %1047 = vmatprep.subr.bf16.mxu0 %v911
    %1048 = vmatpush1.bf16.msra.mxu0 %v910
    %1049 = vmatprep.mubr.bf16.mxu0 %v579
    %1050 = vmatmul.mubr.bf16.gmra.mrb[0].mxu0 %v578
    %v1051 = vpop.f32.mrb[0].mxu0
    %v1052 = vadd.f32 %v1011, %v1051
    %v1053 = vpop.f32.mrb[0].mxu0
    %v1054 = vadd.f32 %v1013, %v1053
    %v1055 = vpop.f32.mrb[0].mxu0
    %v1056 = vpop.f32.mrb[0].mxu0
    %1057 = vdwg.mxu0
    %vm1058 = vcmp.gt.f32.partialorder %v1052, 0.0
    %vm1059 = vcmp.gt.f32.partialorder %v1054, 0.0
    %v1060 = vmul.f32 %v1052, 0.2
    %v1061 = vmul.f32 %v1054, 0.2
    %v1062 = vsel %vm1058, %v1052, %v1060
    %v1063 = vsel %vm1059, %v1054, %v1061
    %v1064 = vld [vmem:[%s5] sm:$0x3]
    %v1066 = vlaneseq
    %v1067 = vshrl.u32 %v1066, 7
    %v1068 = vsub.s32 0, %v1067
    %v1069 = vrot.slane %v1064, %v1068
    %v1070 = vlaneseq
    %v1071 = vshrl.u32 %v1070, 7
    %v1072 = vsub.s32 1, %v1071
    %v1073 = vrot.slane %v1064, %v1072
    %v1076 = vmul.f32 %v1062, %v1069
    %v1077 = vmul.f32 %v1063, %v1073
    %v1078 = vadd.f32 %v1076, %v1077
    %1079 = vadd.xlane.f32.xlu0 %v1078
    %v1080 = vpop.xlane.xlu0 %1079
    %v1081 = vld [vmem:[#allocation2] sm:$0x1]
    %v1083 = vlaneseq
    %v1084 = vshrl.u32 %v1083, 7
    %v1085 = vsub.s32 0, %v1084
    %v1086 = vrot.slane %v1081, %v1085
    %v1088 = vadd.f32 %v1080, %v1086
    %v1089 = vsub.f32 0.0, %v1088
    %v1090 = vmul.f32 %v1089, 1.442695
    %v1091 = vpow.pop %v1090
    %v1092 = vadd.f32 %v1091, 1.0
    %v1093 = vrcp.pop %v1092
    %1095 = vset.pattern.permute.xlu0 0
    %1096 = vperm.xlu0 %1095, %v1093
    %v1097 = vpop.permute.xlu0 %1096
    %1099 = vst [vmem:[#allocation9] sm:$0xff] %v1097
    // Predicated region
    $region42: #{tpu_custom_call.1} parent=1 // pred_check
      _
    $region43: #{tpu_custom_call.1} parent=1 // pred_check_branch
      %1101 = sbr.rel (0) target = $region45
    $region44: #{tpu_custom_call.1} parent=1 // pred_region
      %s1103 = ssub.s32 128, 128
      %1104 = vsyncadd [#allocation5], %s1103
      %s1106 = sshll.u32 [#allocation9], 4
      %s1107 = int_to_ptr.vmem [resolvable:$true] %s1106
      %1109 = dma.vmem_to_hbm [thread:$0]  %s1107, 128, %s7, [#allocation5]
    $region45: #{tpu_custom_call.1} parent=1 // pred_fallthru
      _
    // Predicated region
    $region46: #{tpu_custom_call.1} parent=1 // pred_check
      _
    $region47: #{tpu_custom_call.1} parent=1 // pred_check_branch
      %1111 = sbr.rel (0) target = $region49
    $region48: #{tpu_custom_call.1} parent=1 // pred_region
      %1112 = dma.done [#allocation5], 128
    $region49: #{tpu_custom_call.1} parent=1 // pred_fallthru
      _
    %1113 = vsyncpa [#allocation4], 1
    %1114 = vsyncpa [#allocation7], 1
    %1115 = vsyncpa [#allocation5], 1

</llo_original>
